<compile_context>
chip_gen: v6e
topology: v6e:2x2x1
jax: 0.10.0
libtpu: 0.0.40
codegen_flags: <defaults>
</compile_context>

<pallas_src>
import jax
import jax.numpy as jnp
from jax.experimental import pallas as pl
from jax.experimental.pallas import tpu as pltpu

LANE = 128
SUBLANE = 8


def _tensorcores_per_chip():
    """Best-effort TensorCores-per-chip (2 on v7x, 1 on v5e/v6e)."""
    try:
        info = pltpu.get_tpu_info()
        for name in ("num_tensorcores", "tensorcore_count", "num_cores",
                     "cores_per_chip"):
            v = getattr(info, name, None)
            if isinstance(v, int) and v > 0:
                return v
    except Exception:
        pass
    try:
        v = getattr(jax.devices()[0], "num_cores", None)
        if isinstance(v, int) and v > 0:
            return v
    except Exception:
        pass
    return 1


def _make_l1_kernel(rows, tile_rows, tiles_per_split, needs_mask):
    vregs_per_tile = tile_rows // SUBLANE

    def kernel(y_ref, z_ref, o_ref, acc_ref):
        i = pl.program_id(1)

        # Zero this split's resident (8, 128) accumulator on its first step.
        @pl.when(i == 0)
        def _():
            acc_ref[...] = jnp.zeros_like(acc_ref)

        # Cast happens in-kernel so bf16/fp8 inputs only move native HBM bytes.
        diff = jnp.abs(
            y_ref[...].astype(jnp.float32) - z_ref[...].astype(jnp.float32)
        )

        def _accumulate(d):
            # Fold the tile onto one (8, 128) vreg with pure elementwise adds
            # (VPU only); the expensive cross-lane reduce happens once, below.
            acc_ref[...] += jnp.sum(
                d.reshape(vregs_per_tile, SUBLANE, LANE), axis=0
            )

        if needs_mask:
            # Statically-known ragged row tail / clamped duplicate tile.
            c = pl.program_id(0)
            row_start = (c * tiles_per_split + i) * tile_rows
            valid = rows - row_start  # <= 0 for a clamped duplicate tile

            # Gate the mask behind a scalar pl.when so full tiles pay zero
            # extra VALU ops (no iota/cmp/select on the fast path).
            @pl.when(valid >= tile_rows)
            def _():
                _accumulate(diff)

            @pl.when(valid < tile_rows)
            def _():
                # Rows past `valid` hold garbage from the partial-edge-block
                # DMA (or belong to a clamped duplicate tile); jnp.where
                # selects 0 so NaN/Inf garbage never propagates (do NOT
                # replace the select with a multiply-by-mask).
                row_ids = jax.lax.broadcasted_iota(
                    jnp.int32, (tile_rows, LANE), 0
                )
                _accumulate(jnp.where(row_ids < valid, diff, 0.0))
        else:
            _accumulate(diff)

        # Final sublane reduce (XLU — idle slot in this VPU/DMA-bound kernel)
        # once per split: emit a lane-dense (1, 1, 128) row.
        @pl.when(i == pl.num_programs(1) - 1)
        def _():
            o_ref[...] = jnp.sum(acc_ref[...], axis=0).reshape(1, 1, LANE)

    return kernel


def l1_loss_pallas(y, z, *, tile_rows=None, min_pallas_elems=1 << 20):
    """Mean absolute error, equivalent to torch.abs(y - z).mean()."""
    assert y.shape == z.shape, "y and z must have the same shape"
    n = y.size
    out_dtype = jnp.promote_types(y.dtype, z.dtype)

    aligned = (n // LANE) * LANE
    rows = aligned // LANE

    # Sublane pack of the narrower input dtype (8 f32 / 16 bf16 / 32 int8).
    itemsize_min = min(y.dtype.itemsize, z.dtype.itemsize)
    itemsize_max = max(y.dtype.itemsize, z.dtype.itemsize)
    pack = SUBLANE * max(1, 4 // max(1, itemsize_min))

    # Small-input fast path: a fused XLA elementwise+reduce beats pallas_call
    # launch + pipeline warmup for tiny losses on every TPU generation.
    if n < min_pallas_elems or rows < pack:
        d = jnp.abs(y.astype(jnp.float32) - z.astype(jnp.float32))
        return jnp.mean(d).astype(out_dtype)

    yf = y.reshape(-1)
    zf = z.reshape(-1)

    # No jnp.pad of the whole tensor: run the kernel on the 128-aligned prefix
    # and fold the (< 128 element) remainder in with a tiny plain-JAX sum.
    if aligned == n:
        y2 = yf.reshape(rows, LANE)
        z2 = zf.reshape(rows, LANE)
    else:
        y2 = yf[:aligned].reshape(rows, LANE)
        z2 = zf[:aligned].reshape(rows, LANE)

    # Tile rows: ~2 MiB of native-dtype HBM traffic per input per grid step
    # (4096 f32 / 8192 bf16 rows), rounded to the pack factor, never > rows.
    if tile_rows is None:
        tile_rows = (2 << 20) // (LANE * itemsize_max)
    tile_rows = max(pack, (min(tile_rows, (rows // pack) * pack) // pack) * pack)
    total_tiles = -(-rows // tile_rows)

    # Two-way split of the row tiles across a "parallel" leading grid axis so a
    # 2-TensorCore chip (v7x) streams HBM with both cores.  On detected
    # single-TC chips only split when the tile count is even, so the clamped
    # duplicate-tile re-read is never paid there.
    # (If xprof shows only one active core on v7x, switch this axis to
    #  pltpu.CORE_PARALLEL.)
    n_tc = _tensorcores_per_chip()
    if total_tiles >= 2 and (n_tc >= 2 or total_tiles % 2 == 0):
        num_splits = 2
    else:
        num_splits = 1
    tiles_per_split = -(-total_tiles // num_splits)
    coverage = num_splits * tiles_per_split
    needs_mask = coverage * tile_rows != rows

    if coverage == total_tiles:
        def in_index(c, i):
            return (c * tiles_per_split + i, 0)
    else:
        # Odd tile count on a 2-TC chip: the one duplicate tile re-reads a
        # valid block and is fully masked to zero inside the kernel.
        def in_index(c, i):
            return (jnp.minimum(c * tiles_per_split + i, total_tiles - 1), 0)

    kernel = _make_l1_kernel(rows, tile_rows, tiles_per_split, needs_mask)

    # Double-buffered native-dtype input blocks + headroom for in-kernel f32
    # temporaries; also covers v5e's 16 MiB scoped default if tiles are raised.
    in_block_bytes = tile_rows * LANE * (y2.dtype.itemsize + z2.dtype.itemsize)
    vmem_limit = int(min(max(32 << 20, 2 * in_block_bytes + (12 << 20)), 48 << 20))

    partials = pl.pallas_call(
        kernel,
        out_shape=jax.ShapeDtypeStruct((num_splits, 1, LANE), jnp.float32),
        grid_spec=pltpu.PrefetchScalarGridSpec(
            num_scalar_prefetch=0,
            grid=(num_splits, tiles_per_split),
            in_specs=[
                pl.BlockSpec((tile_rows, LANE), in_index),
                pl.BlockSpec((tile_rows, LANE), in_index),
            ],
            out_specs=pl.BlockSpec((1, 1, LANE), lambda c, i: (c, 0, 0)),
            scratch_shapes=[pltpu.VMEM((SUBLANE, LANE), jnp.float32)],
        ),
        compiler_params=pltpu.CompilerParams(
            dimension_semantics=("parallel", "arbitrary"),
            vmem_limit_bytes=vmem_limit,
        ),
    )(y2, z2)

    total = jnp.sum(partials)  # tiny (num_splits * 128) final reduce
    if aligned != n:
        tail = jnp.abs(
            yf[aligned:].astype(jnp.float32) - zf[aligned:].astype(jnp.float32)
        )
        total = total + jnp.sum(tail)

    # NOTE: single-pass f32 accumulation; fine for a loss, may drift slightly
    # vs a pairwise reduction for n >~ 1e8 elements.
    return (total / jnp.float32(n)).astype(out_dtype)


if __name__ == "__main__":
    key = jax.random.PRNGKey(0)
    k1, k2 = jax.random.split(key)

    # Small NCHW-like shapes consistent with a generic loss module.
    y = jax.random.normal(k1, (2, 4, 16, 16), dtype=jnp.float32)
    z = jax.random.normal(k2, (2, 4, 16, 16), dtype=jnp.float32)
    ref = jnp.mean(jnp.abs(y - z))

    # Force the Pallas path even at this small size so the kernel is exercised.
    out = jax.block_until_ready(l1_loss_pallas(y, z, min_pallas_elems=0))
    assert jnp.allclose(out, ref, rtol=1e-5, atol=1e-6), (out, ref)

    # Ragged element count (n % 128 != 0): exercises the aligned-prefix kernel,
    # the plain-JAX tail fold, and the pl.when-gated row-tail mask branch.
    y_r = jax.random.normal(k1, (3, 5, 7, 11), dtype=jnp.float32)
    z_r = jax.random.normal(k2, (3, 5, 7, 11), dtype=jnp.float32)
    out_r = jax.block_until_ready(l1_loss_pallas(y_r, z_r, min_pallas_elems=0))
    ref_r = jnp.mean(jnp.abs(y_r - z_r))
    assert jnp.allclose(out_r, ref_r, rtol=1e-5, atol=1e-6), (out_r, ref_r)

    # Default small-input fast path (fused XLA) for tiny tensors.
    out_fp = jax.block_until_ready(l1_loss_pallas(y, z))
    assert jnp.allclose(out_fp, ref, rtol=1e-5, atol=1e-6), (out_fp, ref)

    print("KERNEL_OK")
</pallas_src>

<mosaic_0001>
module attributes {stable_mosaic.version = 11 : i64} {
  func.func @kernel(%arg0: i32, %arg1: i32, %arg2: memref<16x128xf32, #tpu.memory_space<vmem>>, %arg3: memref<16x128xf32, #tpu.memory_space<vmem>>, %arg4: memref<1x1x128xf32, #tpu.memory_space<vmem>>, %arg5: memref<8x128xf32, #tpu.memory_space<vmem>>) attributes {dimension_semantics = [#tpu.dimension_semantics<parallel>, #tpu.dimension_semantics<arbitrary>], iteration_bounds = array<i64: 1, 1>, scalar_prefetch = 0 : i64, scratch_operands = 1 : i64, tpu.core_type = #tpu.core_type<tc>, window_params = [{transform_indices = @transform_0, window_bounds = array<i64: 16, 128>}, {transform_indices = @transform_1, window_bounds = array<i64: 16, 128>}, {transform_indices = @transform_2, window_bounds = array<i64: 1, 1, 128>}]} {
    %c0_i32 = arith.constant 0 : i32
    %0 = arith.cmpi eq, %arg1, %c0_i32 : i32
    %1 = arith.extui %0 : i1 to i32
    %c0_i32_0 = arith.constant 0 : i32
    %2 = arith.cmpi ne, %1, %c0_i32_0 : i32
    scf.if %2 {
      %cst_10 = arith.constant 0.000000e+00 : f32
      %15 = vector.broadcast %cst_10 : f32 to vector<8x128xf32>
      %c0_11 = arith.constant 0 : index
      %c0_12 = arith.constant 0 : index
      %16 = vector.load %arg5[%c0_11, %c0_12] : memref<8x128xf32, #tpu.memory_space<vmem>>, vector<8x128xf32>
      tpu.vector_store %arg5[%c0_11, %c0_12], %15 {strides = array<i32>} : memref<8x128xf32, #tpu.memory_space<vmem>>, vector<8x128xf32>,
    } else {
    }
    %c0 = arith.constant 0 : index
    %c0_1 = arith.constant 0 : index
    %3 = vector.load %arg2[%c0, %c0_1] : memref<16x128xf32, #tpu.memory_space<vmem>>, vector<16x128xf32>
    %c0_2 = arith.constant 0 : index
    %c0_3 = arith.constant 0 : index
    %4 = vector.load %arg3[%c0_2, %c0_3] : memref<16x128xf32, #tpu.memory_space<vmem>>, vector<16x128xf32>
    %5 = arith.subf %3, %4 : vector<16x128xf32>
    %6 = math.absf %5 : vector<16x128xf32>
    %c0_4 = arith.constant 0 : index
    %c0_5 = arith.constant 0 : index
    %7 = vector.load %arg5[%c0_4, %c0_5] : memref<8x128xf32, #tpu.memory_space<vmem>>, vector<8x128xf32>
    %8 = vector.shape_cast %6 : vector<16x128xf32> to vector<2x8x128xf32>
    %cst = arith.constant dense<0.000000e+00> : vector<8x128xf32>
    %9 = vector.multi_reduction <add>, %8, %cst [0] : vector<2x8x128xf32> to vector<8x128xf32>
    %10 = arith.addf %7, %9 : vector<8x128xf32>
    %c0_6 = arith.constant 0 : index
    %c0_7 = arith.constant 0 : index
    %11 = vector.load %arg5[%c0_6, %c0_7] : memref<8x128xf32, #tpu.memory_space<vmem>>, vector<8x128xf32>
    tpu.vector_store %arg5[%c0_6, %c0_7], %10 {strides = array<i32>} : memref<8x128xf32, #tpu.memory_space<vmem>>, vector<8x128xf32>,
    %c0_i32_8 = arith.constant 0 : i32
    %12 = arith.cmpi eq, %arg1, %c0_i32_8 : i32
    %13 = arith.extui %12 : i1 to i32
    %c0_i32_9 = arith.constant 0 : i32
    %14 = arith.cmpi ne, %13, %c0_i32_9 : i32
    scf.if %14 {
      %c0_10 = arith.constant 0 : index
      %c0_11 = arith.constant 0 : index
      %15 = vector.load %arg5[%c0_10, %c0_11] : memref<8x128xf32, #tpu.memory_space<vmem>>, vector<8x128xf32>
      %cst_12 = arith.constant dense<0.000000e+00> : vector<128xf32>
      %16 = vector.multi_reduction <add>, %15, %cst_12 [0] : vector<8x128xf32> to vector<128xf32>
      %17 = vector.shape_cast %16 : vector<128xf32> to vector<1x1x128xf32>
      %c0_13 = arith.constant 0 : index
      %c0_14 = arith.constant 0 : index
      %c0_15 = arith.constant 0 : index
      %18 = vector.load %arg4[%c0_13, %c0_14, %c0_15] : memref<1x1x128xf32, #tpu.memory_space<vmem>>, vector<1x1x128xf32>
      tpu.vector_store %arg4[%c0_13, %c0_14, %c0_15], %17 {strides = array<i32>} : memref<1x1x128xf32, #tpu.memory_space<vmem>>, vector<1x1x128xf32>,
    } else {
    }
    return
  }
  func.func @transform_0(%arg0: i32, %arg1: i32) -> (i32, i32) {
    %c1_i32 = arith.constant 1 : i32
    %0 = arith.muli %arg0, %c1_i32 : i32
    %1 = arith.addi %0, %arg1 : i32
    %c0_i32 = arith.constant 0 : i32
    %c0_i32_0 = arith.constant 0 : i32
    return %1, %c0_i32 : i32, i32
  }
  func.func @transform_1(%arg0: i32, %arg1: i32) -> (i32, i32) {
    %c1_i32 = arith.constant 1 : i32
    %0 = arith.muli %arg0, %c1_i32 : i32
    %1 = arith.addi %0, %arg1 : i32
    %c0_i32 = arith.constant 0 : i32
    %c0_i32_0 = arith.constant 0 : i32
    return %1, %c0_i32 : i32, i32
  }
  func.func @transform_2(%arg0: i32, %arg1: i32) -> (i32, i32, i32) {
    %c0_i32 = arith.constant 0 : i32
    %c0_i32_0 = arith.constant 0 : i32
    %c0_i32_1 = arith.constant 0 : i32
    return %arg0, %c0_i32, %c0_i32_0 : i32, i32, i32
  }
}

</mosaic_0001>

<llo_original>
// kernel: tpu_custom_call.1
$region0: #{tpu_custom_call.1}
  #allocation0 [shape = 'u32[]', space=smem, size = 0x4, offset = 0x4, fixed_abs, tag = 'smem constant byte address 0x4 - core index']
  #allocation1 [shape = 'u32[144,128]{1,0:T(1,128)}', space=vmem, size = 0x12000, scoped, tag = 'internal scratch']
  #allocation2 [shape = 'f32[8,128]{1,0:T(8,128)}', space=vmem, size = 0x1000, scoped, tag = 'scratch operand']
  %s0 = inlined_call_operand.hbm [shape: f32[16,128], index: 0, kind: input, shape index: {}]
  %s1 = inlined_call_operand.hbm [shape: f32[16,128], index: 1, kind: input, shape index: {}]
  %s2 = inlined_call_operand.hbm [shape: f32[1,1,128], index: 2, kind: output, shape index: {}]
  %s3 = sld [smem:[#allocation0]]
  $region34: #{tpu_custom_call.1} parent=0
    _
  %s5 = ssub.s32 1, %s3
  %s6 = scalar_select 0, %s5, %s3
  $region1: #{tpu_custom_call.1} parent=0
    #allocation3 [shape = 'u8[8192]{0}', space=vmem, size = 0x2000, scoped, tag = 'input window, operand 0, single buffered']
    #allocation4 [shape = 's32[1]{0}', space=sflag, size = 0x4, scoped, tag = 'scoped memory for tpu_custom_call.1']
    #allocation5 [shape = 's32[1]{0}', space=sflag, size = 0x4, scoped, tag = 'scoped memory for tpu_custom_call.1']
    #allocation6 [shape = 'u8[8192]{0}', space=vmem, size = 0x2000, scoped, tag = 'input window, operand 1, single buffered']
    #allocation7 [shape = 's32[1]{0}', space=sflag, size = 0x4, scoped, tag = 'scoped memory for tpu_custom_call.1']
    #allocation8 [shape = 'u8[512]{0}', space=vmem, size = 0x400, scoped, tag = 'output window, operand 0, single buffered']
    %7 = vsyncpa [#allocation4], 0
    %8 = vsyncpa [#allocation7], 0
    %9 = vsyncpa [#allocation5], 0
    // Predicated region
    $region2: #{tpu_custom_call.1} parent=1 // pred_check
      _
    $region3: #{tpu_custom_call.1} parent=1 // pred_check_branch
      %11 = sbr.rel (0) target = $region5
    $region4: #{tpu_custom_call.1} parent=1 // pred_region
      %s12 = sadd.s32 0, 0
      %s13 = smul.u32 2, %s12
      %s15 = ssub.s32 256, 256
      %16 = vsyncadd [#allocation4], %s15
      %s17 = smul.addr %s13, 128
      %s18 = scalar_lea.hbm %s0, %s17
      %s19 = sshll.u32 [#allocation3], 4
      %s20 = int_to_ptr.vmem [resolvable:$true] %s19
      %25 = dma.hbm_to_vmem [thread:$0]  %s18, 256, %s20, [#allocation4], 128, 128, 8
    $region5: #{tpu_custom_call.1} parent=1 // pred_fallthru
      _
    // Predicated region
    $region6: #{tpu_custom_call.1} parent=1 // pred_check
      _
    $region7: #{tpu_custom_call.1} parent=1 // pred_check_branch
      %27 = sbr.rel (0) target = $region9
    $region8: #{tpu_custom_call.1} parent=1 // pred_region
      %s28 = sadd.s32 0, 0
      %s29 = smul.u32 2, %s28
      %s31 = ssub.s32 256, 256
      %32 = vsyncadd [#allocation7], %s31
      %s33 = smul.addr %s29, 128
      %s34 = scalar_lea.hbm %s1, %s33
      %s35 = sshll.u32 [#allocation6], 4
      %s36 = int_to_ptr.vmem [resolvable:$true] %s35
      %41 = dma.hbm_to_vmem [thread:$0]  %s34, 256, %s36, [#allocation7], 128, 128, 8
    $region9: #{tpu_custom_call.1} parent=1 // pred_fallthru
      _
    // Predicated region
    $region10: #{tpu_custom_call.1} parent=1 // pred_check
      _
    $region11: #{tpu_custom_call.1} parent=1 // pred_check_branch
      %43 = sbr.rel (0) target = $region13
    $region12: #{tpu_custom_call.1} parent=1 // pred_region
      %44 = dma.done [#allocation4], 256
    $region13: #{tpu_custom_call.1} parent=1 // pred_fallthru
      _
    // Predicated region
    $region14: #{tpu_custom_call.1} parent=1 // pred_check
      _
    $region15: #{tpu_custom_call.1} parent=1 // pred_check_branch
      %46 = sbr.rel (0) target = $region17
    $region16: #{tpu_custom_call.1} parent=1 // pred_region
      %47 = dma.done [#allocation7], 256
    $region17: #{tpu_custom_call.1} parent=1 // pred_fallthru
      _
    %s48 = sadd.s32 0, 0
    %s49 = smul.u32 2, %s48
    %s50 = sadd.s32 0, 0
    %s51 = smul.u32 2, %s50
    %p52 = scmp.eq.s32.totalorder 0, 0
    // Predicated region
    $region18: #{tpu_custom_call.1} parent=1 // pred_check
      %p53 = pneg %p52
    $region19: #{tpu_custom_call.1} parent=1 // pred_check_branch
      %55 = sbr.rel (%p53) target = $region21
    $region20: #{tpu_custom_call.1} parent=1 // pred_region
      %56 = vst [vmem:[#allocation2] sm:$0xff] 0.0
    $region21: #{tpu_custom_call.1} parent=1 // pred_fallthru
      _
    %v57 = vld [vmem:[#allocation3] sm:$0xff]
    %v58 = vld [vmem:[#allocation3 + $0x8] sm:$0xff]
    %v59 = vld [vmem:[#allocation6] sm:$0xff]
    %v60 = vld [vmem:[#allocation6 + $0x8] sm:$0xff]
    %v61 = vsub.f32 %v57, %v59
    %v62 = vsub.f32 %v58, %v60
    %v63 = vand.u32 2147483647, %v61
    %v64 = vand.u32 2147483647, %v62
    %v65 = vld [vmem:[#allocation2] sm:$0xff]
    %v66 = vadd.f32 %v63, %v64
    %v67 = vadd.f32 %v65, %v66
    %68 = vst [vmem:[#allocation2] sm:$0xff] %v67
    // Predicated region
    $region22: #{tpu_custom_call.1} parent=1 // pred_check
      %p69 = pneg %p52
    $region23: #{tpu_custom_call.1} parent=1 // pred_check_branch
      %71 = sbr.rel (%p69) target = $region25
    $region24: #{tpu_custom_call.1} parent=1 // pred_region
      %v72 = vld [vmem:[#allocation2] sm:$0xff]
      %v73 = vrot.slane %v72, 4
      %v74 = vadd.f32 %v72, %v73
      %v75 = vrot.slane %v74, 2
      %v76 = vadd.f32 %v74, %v75
      %v77 = vrot.slane %v76, 1
      %v78 = vadd.f32 %v76, %v77
      %79 = vst [vmem:[#allocation8] sm:$0x1] %v78
    $region25: #{tpu_custom_call.1} parent=1 // pred_fallthru
      _
    // Predicated region
    $region26: #{tpu_custom_call.1} parent=1 // pred_check
      _
    $region27: #{tpu_custom_call.1} parent=1 // pred_check_branch
      %81 = sbr.rel (0) target = $region29
    $region28: #{tpu_custom_call.1} parent=1 // pred_region
      %s83 = ssub.s32 16, 16
      %84 = vsyncadd [#allocation5], %s83
      %s86 = sshll.u32 [#allocation8], 4
      %s87 = int_to_ptr.vmem [resolvable:$true] %s86
      %89 = dma.vmem_to_hbm [thread:$0]  %s87, 16, %s2, [#allocation5]
    $region29: #{tpu_custom_call.1} parent=1 // pred_fallthru
      _
    // Predicated region
    $region30: #{tpu_custom_call.1} parent=1 // pred_check
      _
    $region31: #{tpu_custom_call.1} parent=1 // pred_check_branch
      %91 = sbr.rel (0) target = $region33
    $region32: #{tpu_custom_call.1} parent=1 // pred_region
      %92 = dma.done [#allocation5], 16
    $region33: #{tpu_custom_call.1} parent=1 // pred_fallthru
      _
    %93 = vsyncpa [#allocation4], 1
    %94 = vsyncpa [#allocation7], 1
    %95 = vsyncpa [#allocation5], 1

</llo_original>
